<compile_context>
chip_gen: v7x
topology: tpu7x:2x2x1
jax: 0.10.0
libtpu: 0.0.40
codegen_flags: <defaults>
</compile_context>

<pallas_src>
import functools

import jax
import jax.numpy as jnp
from jax import lax
from jax.experimental import pallas as pl
from jax.experimental.pallas import tpu as pltpu


def _round_up(x, m):
    return ((x + m - 1) // m) * m


def _cdiv(a, b):
    return -(-a // b)


def _vmem_capacity_bytes():
    try:
        return int(pltpu.get_tpu_info().vmem_capacity_bytes)
    except Exception:
        return 64 * 1024 * 1024  # conservative (v7x-sized) fallback


def focal_loss_kernel(x_ref, t_ref, o_ref, acc_ref, *, n_valid, tile_n, tiles_per_core):
    # x_ref: (tile_n, C) logits (native dtype)    t_ref: (tile_n, 1) int32 targets
    # o_ref: (1, 8, 128) f32 per-core output slab acc_ref: (tile_n, 1) f32 scratch
    core = pl.program_id(0)   # "parallel"  : TensorCore split
    i = pl.program_id(1)      # "arbitrary" : reduction over batch tiles

    @pl.when(i == 0)
    def _():
        acc_ref[...] = jnp.zeros_like(acc_ref)

    x = x_ref[...].astype(jnp.float32)                 # cast in-kernel (bf16-friendly DMA)
    t = t_ref[...]                                     # (tile_n, 1) int32
    tn, nc = x.shape

    # one-hot pick of the target logit via iota/compare (VPU/XLU filler, no MXU)
    class_ids = lax.broadcasted_iota(jnp.int32, (tn, nc), 1)
    onehot = class_ids == t                            # (tile_n, C) bool

    # numerically stable log-softmax denominator (class dim == full array dim, so
    # no padded lanes are logically visible; the compiler masks layout padding)
    row_max = jnp.max(x, axis=-1, keepdims=True)                           # (tile_n, 1)
    lse = jnp.log(jnp.sum(jnp.exp(x - row_max), axis=-1, keepdims=True)) + row_max
    picked = jnp.sum(jnp.where(onehot, x, 0.0), axis=-1, keepdims=True)    # x[i, target[i]]
    log_prob = picked - lse                                                # (tile_n, 1)

    # mask: ragged final block rows (>= N) and duplicated clamped blocks on the
    # second core (unclamped tile index beyond the real tile count).
    tile_idx = core * tiles_per_core + i
    row_ids = tile_idx * tile_n + lax.broadcasted_iota(jnp.int32, (tn, 1), 0)
    log_prob = jnp.where(row_ids < n_valid, log_prob, 0.0)

    acc_ref[...] += log_prob                           # per-row vector accumulator

    @pl.when(i == pl.num_programs(1) - 1)
    def _():
        # single scalar reduce per core; splat into a lane-dense (8,128) slab.
        o_ref[...] = jnp.broadcast_to(jnp.sum(acc_ref[...]), o_ref.shape)


def focal_loss_pallas(x, target, gamma=2.0, tile_rows=None):
    n, num_classes = x.shape
    itemsize = jnp.dtype(x.dtype).itemsize

    # generation-aware budgets: f32 working-tile size & scoped VMEM limit.
    vmem = _vmem_capacity_bytes()
    if vmem >= 100 * 1024 * 1024:          # v5e / v6e: 128 MiB VMEM per TensorCore
        f32_tile_budget = 8 * 1024 * 1024
        vmem_limit = 100 * 1024 * 1024
    else:                                  # v7x: 64 MiB VMEM per TensorCore
        f32_tile_budget = 4 * 1024 * 1024
        vmem_limit = 48 * 1024 * 1024

    if tile_rows is None:
        tile_n = f32_tile_budget // (num_classes * 4)
        tile_n = max(8, (tile_n // 8) * 8)
    else:
        tile_n = max(8, _round_up(int(tile_rows), 8))
    tile_n = min(tile_n, _round_up(n, 8))

    num_cores = 2                                   # v7x dual-TC; serial no-op on v5e/v6e
    total_tiles = _cdiv(n, tile_n)
    tiles_per_core = _cdiv(total_tiles, num_cores)
    last_block = total_tiles - 1

    def blk(core, i):
        # clamp so the DMA never targets a block past the array; the duplicated
        # (clamped) block is fully masked in-kernel via the unclamped tile index.
        return jnp.minimum(core * tiles_per_core + i, last_block)

    t2 = target.astype(jnp.int32).reshape(n, 1)
    grid = (num_cores, tiles_per_core)

    cost = pl.CostEstimate(
        flops=8 * n * num_classes,
        transcendentals=n * num_classes,
        bytes_accessed=n * num_classes * itemsize + n * 4 + num_cores * 8 * 128 * 4,
    )

    partials = pl.pallas_call(
        functools.partial(
            focal_loss_kernel,
            n_valid=n, tile_n=tile_n, tiles_per_core=tiles_per_core),
        out_shape=jax.ShapeDtypeStruct((num_cores, 8, 128), jnp.float32),
        grid_spec=pltpu.PrefetchScalarGridSpec(
            num_scalar_prefetch=0,
            grid=grid,
            in_specs=[
                pl.BlockSpec((tile_n, num_classes), lambda c, i: (blk(c, i), 0)),
                pl.BlockSpec((tile_n, 1), lambda c, i: (blk(c, i), 0)),
            ],
            out_specs=pl.BlockSpec((1, 8, 128), lambda c, i: (c, 0, 0)),
            scratch_shapes=[pltpu.VMEM((tile_n, 1), jnp.float32)],
        ),
        compiler_params=pltpu.CompilerParams(
            dimension_semantics=("parallel", "arbitrary"),
            vmem_limit_bytes=vmem_limit,
        ),
        cost_estimate=cost,
    )(x, t2)

    # tiny focal epilogue on a scalar, done outside the kernel so the per-core
    # partial sums can be produced fully in parallel on v7x.
    total_logprob = jnp.sum(partials[:, 0, 0])
    ce = -total_logprob / n
    logp = -ce
    p = jnp.exp(logp)
    q = 1.0 - p
    if float(gamma).is_integer() and gamma >= 0:
        focal = lax.integer_pow(q, int(gamma))
    else:
        focal = q ** gamma
    return -(focal * logp)


def focal_loss_ref(x, target, gamma=2.0):
    # pure-JAX reference matching PyTorch FocalLoss semantics
    logits = x.astype(jnp.float32)
    lse = jax.scipy.special.logsumexp(logits, axis=-1)
    picked = jnp.take_along_axis(logits, target[:, None].astype(jnp.int32), axis=-1)[:, 0]
    ce = jnp.mean(lse - picked)
    logp = -ce
    p = jnp.exp(logp)
    return -((1.0 - p) ** gamma * logp)


if __name__ == "__main__":
    key = jax.random.PRNGKey(0)
    kx, kt, kx2, kt2 = jax.random.split(key, 4)

    # small case consistent with the module: batch=8, num_classes=32
    N, C = 8, 32
    x = jax.random.normal(kx, (N, C), dtype=jnp.float32)
    target = jax.random.randint(kt, (N,), 0, C, dtype=jnp.int32)

    out = jax.block_until_ready(focal_loss_pallas(x, target, gamma=2.0))
    ref = focal_loss_ref(x, target, gamma=2.0)
    assert jnp.allclose(out, ref, atol=1e-5, rtol=1e-4), (out, ref)

    # unaligned case with a forced small tile: exercises multi-tile accumulation,
    # the ragged final block, and the clamped block index on the second core.
    N2, C2 = 600, 200
    x2 = jax.random.normal(kx2, (N2, C2), dtype=jnp.float32)
    target2 = jax.random.randint(kt2, (N2,), 0, C2, dtype=jnp.int32)

    out2 = jax.block_until_ready(focal_loss_pallas(x2, target2, gamma=2.0, tile_rows=56))
    ref2 = focal_loss_ref(x2, target2, gamma=2.0)
    assert jnp.allclose(out2, ref2, atol=1e-5, rtol=1e-4), (out2, ref2)

    print("KERNEL_OK")
</pallas_src>

<mosaic_0001>
module attributes {stable_mosaic.version = 11 : i64} {
  func.func @focal_loss_kernel(%arg0: i32, %arg1: i32, %arg2: memref<8x32xf32, #tpu.memory_space<vmem>>, %arg3: memref<8x1xi32, #tpu.memory_space<vmem>>, %arg4: memref<1x8x128xf32, #tpu.memory_space<vmem>>, %arg5: memref<8x1xf32, #tpu.memory_space<vmem>>) attributes {dimension_semantics = [#tpu.dimension_semantics<parallel>, #tpu.dimension_semantics<arbitrary>], iteration_bounds = array<i64: 2, 1>, scalar_prefetch = 0 : i64, scratch_operands = 1 : i64, tpu.core_type = #tpu.core_type<tc>, window_params = [{transform_indices = @transform_0, window_bounds = array<i64: 8, 32>}, {transform_indices = @transform_1, window_bounds = array<i64: 8, 1>}, {transform_indices = @transform_2, window_bounds = array<i64: 1, 8, 128>}]} {
    %c0_i32 = arith.constant 0 : i32
    %0 = arith.cmpi eq, %arg1, %c0_i32 : i32
    %1 = arith.extui %0 : i1 to i32
    %c0_i32_0 = arith.constant 0 : i32
    %2 = arith.cmpi ne, %1, %c0_i32_0 : i32
    scf.if %2 {
      %cst_15 = arith.constant 0.000000e+00 : f32
      %38 = vector.broadcast %cst_15 : f32 to vector<8x1xf32>
      %c0_16 = arith.constant 0 : index
      %c0_17 = arith.constant 0 : index
      %39 = vector.load %arg5[%c0_16, %c0_17] : memref<8x1xf32, #tpu.memory_space<vmem>>, vector<8x1xf32>
      tpu.vector_store %arg5[%c0_16, %c0_17], %38 {strides = array<i32>} : memref<8x1xf32, #tpu.memory_space<vmem>>, vector<8x1xf32>,
    } else {
    }
    %c0 = arith.constant 0 : index
    %c0_1 = arith.constant 0 : index
    %3 = vector.load %arg2[%c0, %c0_1] : memref<8x32xf32, #tpu.memory_space<vmem>>, vector<8x32xf32>
    %c0_2 = arith.constant 0 : index
    %c0_3 = arith.constant 0 : index
    %4 = vector.load %arg3[%c0_2, %c0_3] : memref<8x1xi32, #tpu.memory_space<vmem>>, vector<8x1xi32>
    %5 = tpu.iota {dimensions = array<i32: 1>} : vector<8x32xi32>
    %6 = vector.broadcast %4 : vector<8x1xi32> to vector<8x32xi32>
    %7 = arith.cmpi eq, %5, %6 : vector<8x32xi32>
    %cst = arith.constant dense<0xFF800000> : vector<8xf32>
    %8 = vector.multi_reduction <maximumf>, %3, %cst [1] : vector<8x32xf32> to vector<8xf32>
    %9 = vector.shape_cast %8 : vector<8xf32> to vector<8x1xf32>
    %10 = vector.broadcast %9 : vector<8x1xf32> to vector<8x32xf32>
    %11 = arith.subf %3, %10 : vector<8x32xf32>
    %12 = math.exp %11 : vector<8x32xf32>
    %cst_4 = arith.constant dense<0.000000e+00> : vector<8xf32>
    %13 = vector.multi_reduction <add>, %12, %cst_4 [1] : vector<8x32xf32> to vector<8xf32>
    %14 = vector.shape_cast %13 : vector<8xf32> to vector<8x1xf32>
    %15 = math.log %14 : vector<8x1xf32>
    %16 = arith.addf %15, %9 : vector<8x1xf32>
    %cst_5 = arith.constant 0.000000e+00 : f32
    %17 = vector.broadcast %cst_5 : f32 to vector<8x32xf32>
    %18 = arith.select %7, %3, %17 : vector<8x32xi1>, vector<8x32xf32>
    %cst_6 = arith.constant dense<0.000000e+00> : vector<8xf32>
    %19 = vector.multi_reduction <add>, %18, %cst_6 [1] : vector<8x32xf32> to vector<8xf32>
    %20 = vector.shape_cast %19 : vector<8xf32> to vector<8x1xf32>
    %21 = arith.subf %20, %16 : vector<8x1xf32>
    %c1_i32 = arith.constant 1 : i32
    %22 = arith.muli %arg0, %c1_i32 : i32
    %23 = arith.addi %22, %arg1 : i32
    %c8_i32 = arith.constant 8 : i32
    %24 = arith.muli %23, %c8_i32 : i32
    %25 = tpu.iota {dimensions = array<i32: 0>} : vector<8x1xi32>
    %26 = vector.broadcast %24 : i32 to vector<8x1xi32>
    %27 = arith.addi %26, %25 : vector<8x1xi32>
    %c8_i32_7 = arith.constant 8 : i32
    %28 = vector.broadcast %c8_i32_7 : i32 to vector<8x1xi32>
    %29 = arith.cmpi slt, %27, %28 : vector<8x1xi32>
    %cst_8 = arith.constant 0.000000e+00 : f32
    %30 = vector.broadcast %cst_8 : f32 to vector<8x1xf32>
    %31 = arith.select %29, %21, %30 : vector<8x1xi1>, vector<8x1xf32>
    %c0_9 = arith.constant 0 : index
    %c0_10 = arith.constant 0 : index
    %32 = vector.load %arg5[%c0_9, %c0_10] : memref<8x1xf32, #tpu.memory_space<vmem>>, vector<8x1xf32>
    %33 = arith.addf %32, %31 : vector<8x1xf32>
    %c0_11 = arith.constant 0 : index
    %c0_12 = arith.constant 0 : index
    %34 = vector.load %arg5[%c0_11, %c0_12] : memref<8x1xf32, #tpu.memory_space<vmem>>, vector<8x1xf32>
    tpu.vector_store %arg5[%c0_11, %c0_12], %33 {strides = array<i32>} : memref<8x1xf32, #tpu.memory_space<vmem>>, vector<8x1xf32>,
    %c0_i32_13 = arith.constant 0 : i32
    %35 = arith.cmpi eq, %arg1, %c0_i32_13 : i32
    %36 = arith.extui %35 : i1 to i32
    %c0_i32_14 = arith.constant 0 : i32
    %37 = arith.cmpi ne, %36, %c0_i32_14 : i32
    scf.if %37 {
      %c0_15 = arith.constant 0 : index
      %c0_16 = arith.constant 0 : index
      %38 = vector.load %arg5[%c0_15, %c0_16] : memref<8x1xf32, #tpu.memory_space<vmem>>, vector<8x1xf32>
      %39 = vector.shape_cast %38 : vector<8x1xf32> to vector<1x8x1xf32>
      %cst_17 = arith.constant dense<0.000000e+00> : vector<1xf32>
      %40 = vector.multi_reduction <add>, %39, %cst_17 [1, 2] : vector<1x8x1xf32> to vector<1xf32>
      %41 = vector.shape_cast %40 : vector<1xf32> to vector<1x1x1xf32>
      %42 = vector.extract %41[0, 0, 0] : f32 from vector<1x1x1xf32>
      %43 = vector.broadcast %42 : f32 to vector<1x8x128xf32>
      %c0_18 = arith.constant 0 : index
      %c0_19 = arith.constant 0 : index
      %c0_20 = arith.constant 0 : index
      %44 = vector.load %arg4[%c0_18, %c0_19, %c0_20] : memref<1x8x128xf32, #tpu.memory_space<vmem>>, vector<1x8x128xf32>
      tpu.vector_store %arg4[%c0_18, %c0_19, %c0_20], %43 {strides = array<i32>} : memref<1x8x128xf32, #tpu.memory_space<vmem>>, vector<1x8x128xf32>,
    } else {
    }
    return
  }
  func.func @transform_0(%arg0: i32, %arg1: i32) -> (i32, i32) {
    %c1_i32 = arith.constant 1 : i32
    %0 = arith.muli %arg0, %c1_i32 : i32
    %1 = arith.addi %0, %arg1 : i32
    %c0_i32 = arith.constant 0 : i32
    %2 = arith.minsi %1, %c0_i32 : i32
    %c0_i32_0 = arith.constant 0 : i32
    %c0_i32_1 = arith.constant 0 : i32
    return %2, %c0_i32_0 : i32, i32
  }
  func.func @transform_1(%arg0: i32, %arg1: i32) -> (i32, i32) {
    %c1_i32 = arith.constant 1 : i32
    %0 = arith.muli %arg0, %c1_i32 : i32
    %1 = arith.addi %0, %arg1 : i32
    %c0_i32 = arith.constant 0 : i32
    %2 = arith.minsi %1, %c0_i32 : i32
    %c0_i32_0 = arith.constant 0 : i32
    %c0_i32_1 = arith.constant 0 : i32
    return %2, %c0_i32_0 : i32, i32
  }
  func.func @transform_2(%arg0: i32, %arg1: i32) -> (i32, i32, i32) {
    %c0_i32 = arith.constant 0 : i32
    %c0_i32_0 = arith.constant 0 : i32
    %c0_i32_1 = arith.constant 0 : i32
    return %arg0, %c0_i32, %c0_i32_0 : i32, i32, i32
  }
}

</mosaic_0001>

<llo_original>
// kernel: tpu_custom_call.1
$region0: #{tpu_custom_call.1}
  #allocation0 [shape = 'u32[]', space=smem, size = 0x4, offset = 0x4, fixed_abs, tag = 'smem constant byte address 0x4 - core index']
  #allocation1 [shape = 'u32[144,128]{1,0:T(1,128)}', space=vmem, size = 0x12000, scoped, tag = 'internal scratch']
  #allocation2 [shape = 'f32[8,1]{1,0:T(8,128)}', space=vmem, size = 0x1000, scoped, tag = 'scratch operand']
  %s0 = inlined_call_operand.vmem [shape: f32[8,32], index: 0, kind: input, shape index: {}]
  %s1 = inlined_call_operand.vmem [shape: s32[8,1], index: 1, kind: input, shape index: {}]
  %s2 = inlined_call_operand.hbm [shape: f32[2,8,128], index: 2, kind: output, shape index: {}]
  %s3 = sld [smem:[#allocation0]]
  $region49: #{tpu_custom_call.1} parent=0
    _
  %s5 = ssub.s32 1, %s3
  %s6 = scalar_select 0, %s5, %s3
  $region1: #{tpu_custom_call.1} parent=0
    #allocation3 [shape = 'u8[8192]{0}', space=vmem, size = 0x2000, scoped, tag = 'output window, operand 0']
    #allocation4 [shape = 's32[2]{0}', space=sflag, size = 0x8, scoped, tag = 'scoped memory for tpu_custom_call.1']
    %7 = vsyncpa [#allocation4], 0
    %s8 = scalar_lea.sflag [#allocation4], 1
    %9 = vsyncpa %s8, 0
    loop: start=0, step=1, limit=4
    $region2: #{tpu_custom_call.1} parent=1 // loop_pre_header
      _
    $region3: #{tpu_custom_call.1} parent=1 // loop_header
      %s11 = sphi 0, %s15
      %p12 = scmp.ge.s32.totalorder %s11, 4
      %s18 = sphi 0, %s30
      %s19 = sphi 0, %s26
      %s20 = sphi 0, %s18
      %s21 = sphi 0, %s19
      %s22 = sphi 0, %s20
      %s23 = sphi 0, %s21
      %s39 = sphi 0, %s41
      %s42 = sphi 0, %s39
      %s43 = sphi 0, %s42
      %s59 = sphi 0, %s43
      %s71 = sphi 0, %s73
      %s74 = sphi 0, %s71
      %s75 = sphi 0, %s74
      %s91 = sphi 0, %s75
      %s97 = sphi 0, %s99
      %s100 = sphi 0, %s97
      %s101 = sphi 0, %s100
      %s117 = sphi 0, %s101
    $region4: #{tpu_custom_call.1} parent=1 // loop_header_branch
      %14 = sbr.rel (%p12) target = $region8
    $region5: #{tpu_custom_call.1} parent=1 // loop_body
      %s16 = ssub.s32 %s11, 1
      %s17 = ssub.s32 %s11, 2
      %s24 = sadd.s32 1, %s19
      %p25 = scmp.ge.s32.totalorder %s24, 1
      %s26 = scalar_select %p25, 0, %s24
      %s27 = sadd.s32 1, %s18
      %s28 = scalar_select %p25, %s27, %s18
      %p29 = scmp.ge.s32.totalorder %s28, 2
      %s30 = scalar_select %p29, 0, %s28
      %s31 = sadd.s32 %s18, %s19
      %p32 = scmp.lt.s32.totalorder %s31, 0
      %s33 = scalar_select %p32, %s31, 0
      %s34 = sadd.s32 %s30, %s26
      %p35 = scmp.lt.s32.totalorder %s34, 0
      %s36 = scalar_select %p35, %s34, 0
      %s37 = ssub.s32 %s33, %s36
      %p38 = scmp.eq.s32.totalorder %s37, 0
      %s40 = sadd.s32 %s39, 1
      %s41 = scalar_select %p38, %s39, %s40
      %p44 = pneg %p38
      %p45 = scmp.eq.s32.totalorder %s11, 1
      %p46 = por %p44, %p45
      %p47 = scmp.ne.s32.totalorder %s39, %s42
      %p48 = scmp.eq.s32.totalorder %s11, 0
      %p49 = por %p47, %p48
      %p50 = scmp.ne.s32.totalorder %s39, %s42
      %p51 = scmp.eq.s32.totalorder %s16, 1
      %p52 = por %p50, %p51
      %p53 = scmp.ne.s32.totalorder %s42, %s43
      %p54 = scmp.eq.s32.totalorder %s16, 0
      %p55 = por %p53, %p54
      %p56 = scmp.ne.s32.totalorder %s42, %s43
      %p57 = scmp.eq.s32.totalorder %s17, 1
      %p58 = por %p56, %p57
      %p60 = scmp.ne.s32.totalorder %s43, %s59
      %p61 = scmp.eq.s32.totalorder %s17, 0
      %p62 = por %p60, %p61
      %s63 = sadd.s32 %s18, %s19
      %p64 = scmp.lt.s32.totalorder %s63, 0
      %s65 = scalar_select %p64, %s63, 0
      %s66 = sadd.s32 %s30, %s26
      %p67 = scmp.lt.s32.totalorder %s66, 0
      %s68 = scalar_select %p67, %s66, 0
      %s69 = ssub.s32 %s65, %s68
      %p70 = scmp.eq.s32.totalorder %s69, 0
      %s72 = sadd.s32 %s71, 1
      %s73 = scalar_select %p70, %s71, %s72
      %p76 = pneg %p70
      %p77 = scmp.eq.s32.totalorder %s11, 1
      %p78 = por %p76, %p77
      %p79 = scmp.ne.s32.totalorder %s71, %s74
      %p80 = scmp.eq.s32.totalorder %s11, 0
      %p81 = por %p79, %p80
      %p82 = scmp.ne.s32.totalorder %s71, %s74
      %p83 = scmp.eq.s32.totalorder %s16, 1
      %p84 = por %p82, %p83
      %p85 = scmp.ne.s32.totalorder %s74, %s75
      %p86 = scmp.eq.s32.totalorder %s16, 0
      %p87 = por %p85, %p86
      %p88 = scmp.ne.s32.totalorder %s74, %s75
      %p89 = scmp.eq.s32.totalorder %s17, 1
      %p90 = por %p88, %p89
      %p92 = scmp.ne.s32.totalorder %s75, %s91
      %p93 = scmp.eq.s32.totalorder %s17, 0
      %p94 = por %p92, %p93
      %s95 = ssub.s32 %s18, %s30
      %p96 = scmp.eq.s32.totalorder %s95, 0
      %s98 = sadd.s32 %s97, 1
      %s99 = scalar_select %p96, %s97, %s98
      %p102 = pneg %p96
      %p103 = scmp.eq.s32.totalorder %s11, 1
      %p104 = por %p102, %p103
      %p105 = scmp.ne.s32.totalorder %s97, %s100
      %p106 = scmp.eq.s32.totalorder %s11, 0
      %p107 = por %p105, %p106
      %p108 = scmp.ne.s32.totalorder %s97, %s100
      %p109 = scmp.eq.s32.totalorder %s16, 1
      %p110 = por %p108, %p109
      %p111 = scmp.ne.s32.totalorder %s100, %s101
      %p112 = scmp.eq.s32.totalorder %s16, 0
      %p113 = por %p111, %p112
      %p114 = scmp.ne.s32.totalorder %s100, %s101
      %p115 = scmp.eq.s32.totalorder %s17, 1
      %p116 = por %p114, %p115
      %p118 = scmp.ne.s32.totalorder %s101, %s117
      %p119 = scmp.eq.s32.totalorder %s17, 0
      %p120 = por %p118, %p119
      %p121 = scmp.le.s32.totalorder 1, %s11
      %p122 = scmp.lt.s32.totalorder %s11, 3
      %p123 = pnand %p121, %p122
      %p124 = pneg %p123
      // Predicated region
      $region9: #{tpu_custom_call.1} parent=5 // pred_check
        _
      $region10: #{tpu_custom_call.1} parent=5 // pred_check_branch
        %126 = sbr.rel (%p123) target = $region12
      $region11: #{tpu_custom_call.1} parent=5 // pred_region
        %s127 = ssub.s32 %s11, 1
      $region12: #{tpu_custom_call.1} parent=5 // pred_fallthru
        _
      %p128 = scmp.lt.s32.totalorder %s11, 2
      // Predicated region
      $region13: #{tpu_custom_call.1} parent=5 // pred_check
        %p129 = pneg %p128
      $region14: #{tpu_custom_call.1} parent=5 // pred_check_branch
        %131 = sbr.rel (%p129) target = $region16
      $region15: #{tpu_custom_call.1} parent=5 // pred_region
        // Predicated region
        $region17: #{tpu_custom_call.1} parent=15 // pred_check
          %p132 = pneg %p49
        $region18: #{tpu_custom_call.1} parent=15 // pred_check_branch
          %134 = sbr.rel (%p132) target = $region20
        $region19: #{tpu_custom_call.1} parent=15 // pred_region
          %s135 = sadd.s32 %s18, %s19
          %p136 = scmp.lt.s32.totalorder %s135, 0
          %s137 = scalar_select %p136, %s135, 0
          %p138 = scmp.lt.s32.totalorder %s137, 0
          %s139 = scalar_select %p138, %s137, 0
          %s140 = smul.addr %s139, 8
          %s141 = scalar_lea.vmem %s0, %s140
          %s142 = sadd.s32 %s18, %s19
          %p143 = scmp.lt.s32.totalorder %s142, 0
          %s144 = scalar_select %p143, %s142, 0
        $region20: #{tpu_custom_call.1} parent=15 // pred_fallthru
          _
        // Predicated region
        $region21: #{tpu_custom_call.1} parent=15 // pred_check
          %p145 = pneg %p81
        $region22: #{tpu_custom_call.1} parent=15 // pred_check_branch
          %147 = sbr.rel (%p145) target = $region24
        $region23: #{tpu_custom_call.1} parent=15 // pred_region
          %s148 = sadd.s32 %s18, %s19
          %p149 = scmp.lt.s32.totalorder %s148, 0
          %s150 = scalar_select %p149, %s148, 0
          %p151 = scmp.lt.s32.totalorder %s150, 0
          %s152 = scalar_select %p151, %s150, 0
          %s153 = smul.addr %s152, 8
          %s154 = scalar_lea.vmem %s1, %s153
          %s155 = sadd.s32 %s18, %s19
          %p156 = scmp.lt.s32.totalorder %s155, 0
          %s157 = scalar_select %p156, %s155, 0
        $region24: #{tpu_custom_call.1} parent=15 // pred_fallthru
          _
      $region16: #{tpu_custom_call.1} parent=5 // pred_fallthru
        _
      %p158 = scmp.le.s32.totalorder 1, %s11
      %p159 = scmp.lt.s32.totalorder %s11, 3
      %p160 = pnand %p158, %p159
      %p161 = pneg %p160
      // Predicated region
      $region25: #{tpu_custom_call.1} parent=5 // pred_check
        _
      $region26: #{tpu_custom_call.1} parent=5 // pred_check_branch
        %163 = sbr.rel (%p160) target = $region28
      $region27: #{tpu_custom_call.1} parent=5 // pred_region
        %s164 = ssub.s32 %s11, 1
        %s165 = sadd.s32 %s20, %s21
        %p166 = scmp.lt.s32.totalorder %s165, 0
        %s167 = scalar_select %p166, %s165, 0
        %p168 = scmp.lt.s32.totalorder %s167, 0
        %s169 = scalar_select %p168, %s167, 0
        %s170 = smul.addr %s169, 8
        %s171 = scalar_lea.vmem %s0, %s170
        %p172 = pneg %p55
        %p173 = pneg %p52
        %s174 = sadd.s32 %s20, %s21
        %p175 = scmp.lt.s32.totalorder %s174, 0
        %s176 = scalar_select %p175, %s174, 0
        %p177 = scmp.lt.s32.totalorder %s176, 0
        %s178 = scalar_select %p177, %s176, 0
        %s179 = smul.addr %s178, 8
        %s180 = scalar_lea.vmem %s1, %s179
        %p181 = pneg %p87
        %p182 = pneg %p84
        %p183 = pneg %p113
        %p184 = pneg %p110
        %s185 = sand.u32 %s100, 1
        %s186 = scalar_lea.sflag [#allocation4], %s185
        %s187 = sand.u32 %s100, 1
        %s188 = smul.addr %s187, 8
        %s189 = scalar_lea.vmem [#allocation3], %s188
        %s190 = sadd.s32 %s20, %s21
        %p191 = scmp.lt.s32.totalorder %s190, 0
        %s192 = scalar_select %p191, %s190, 0
        %p193 = scmp.lt.s32.totalorder %s192, 0
        %s194 = scalar_select %p193, %s192, 0
        %s195 = smul.addr %s194, 8
        %s196 = scalar_lea.vmem %s0, %s195
        %s197 = sadd.s32 %s20, %s21
        %p198 = scmp.lt.s32.totalorder %s197, 0
        %s199 = scalar_select %p198, %s197, 0
        %s200 = sadd.s32 %s20, %s21
        %p201 = scmp.lt.s32.totalorder %s200, 0
        %s202 = scalar_select %p201, %s200, 0
        %p203 = scmp.lt.s32.totalorder %s202, 0
        %s204 = scalar_select %p203, %s202, 0
        %s205 = smul.addr %s204, 8
        %s206 = scalar_lea.vmem %s1, %s205
        %s207 = sadd.s32 %s20, %s21
        %p208 = scmp.lt.s32.totalorder %s207, 0
        %s209 = scalar_select %p208, %s207, 0
        %p210 = scmp.eq.s32.totalorder %s21, 0
        // Predicated region
        $region29: #{tpu_custom_call.1} parent=27 // pred_check
          %p211 = pneg %p210
        $region30: #{tpu_custom_call.1} parent=27 // pred_check_branch
          %213 = sbr.rel (%p211) target = $region32
        $region31: #{tpu_custom_call.1} parent=27 // pred_region
          %vm214 = vcmask 7168
          %215 = vst.msk [vmem:[#allocation2] sm:$0xff] %vm214, 0.0
        $region32: #{tpu_custom_call.1} parent=27 // pred_fallthru
          _
        %v216 = vld [vmem:[%s196] sm:$0xff]
        %v217 = vld [vmem:[%s206] sm:$0xff]
        %v218 = vlaneseq
        %v219 = vand.u32 %v218, 127
        %220 = vset.pattern.permute.xlu0 0
        %221 = vperm.xlu0 %220, %v217
        %v222 = vpop.permute.xlu0 %221
        %vm223 = vcmp.eq.s32.totalorder %v219, %v222
        %vm224 = vcmask 261120
        %v225 = vsel %vm224, %v216, -inf
        %226 = vmax.xlane.f32.xlu0 %v225
        %v227 = vpop.xlane.xlu0 %226
        %v228 = vsub.f32 %v216, %v227
        %v229 = vmul.f32 %v228, 1.442695
        %v230 = vpow.pop %v229
        %v231 = vsel %vm224, %v230, 0.0
        %232 = vadd.xlane.f32.xlu0 %v231
        %v233 = vpop.xlane.xlu0 %232
        %v234 = vlog2.pop %v233
        %v235 = vmul.f32 %v234, 0.6931472
        %v236 = vadd.f32 %v235, %v227
        %v237 = vsel %vm223, %v216, 0.0
        %v238 = vsel %vm224, %v237, 0.0
        %239 = vadd.xlane.f32.xlu0 %v238
        %v240 = vpop.xlane.xlu0 %239
        %v241 = vsub.f32 %v240, %v236
        %s242 = sadd.s32 %s20, %s21
        %s243 = smul.u32 %s242, 8
        %v244 = vlaneseq
        %v245 = vshrl.u32 %v244, 7
        %v246 = vstv %s243
        %v247 = vadd.s32 %v246, %v245
        %vm248 = vcmp.lt.s32.totalorder %v247, 8
        %v249 = vsel %vm248, %v241, 0.0
        %v250 = vld [vmem:[#allocation2] sm:$0xff]
        %v251 = vadd.f32 %v250, %v249
        %vm252 = vcmask 7168
        %253 = vst.msk [vmem:[#allocation2] sm:$0xff] %vm252, %v251
        // Predicated region
        $region33: #{tpu_custom_call.1} parent=27 // pred_check
          %p254 = pneg %p210
        $region34: #{tpu_custom_call.1} parent=27 // pred_check_branch
          %256 = sbr.rel (%p254) target = $region36
        $region35: #{tpu_custom_call.1} parent=27 // pred_region
          %v257 = vld [vmem:[#allocation2] sm:$0xff]
          %v258 = vsel %vm252, %v257, 0.0
          %259 = vadd.xlane.f32.xlu0 %v258
          %v260 = vpop.xlane.xlu0 %259
          %v261 = vrot.slane %v260, 4
          %v262 = vadd.f32 %v260, %v261
          %v263 = vrot.slane %v262, 2
          %v264 = vadd.f32 %v262, %v263
          %v265 = vrot.slane %v264, 1
          %v266 = vadd.f32 %v264, %v265
          %s267 = vtos %v266
          %v268 = vstv %s267
          %269 = vst [vmem:[%s189] sm:$0xff] %v268
        $region36: #{tpu_custom_call.1} parent=27 // pred_fallthru
          _
        %s270 = sand.u32 %s100, 1
        %s271 = scalar_lea.sflag [#allocation4], %s270
        %s272 = sand.u32 %s100, 1
        %s273 = smul.addr %s272, 8
        %s274 = scalar_lea.vmem [#allocation3], %s273
        // Predicated region
        $region37: #{tpu_custom_call.1} parent=27 // pred_check
          %p275 = pneg %p110
        $region38: #{tpu_custom_call.1} parent=27 // pred_check_branch
          %277 = sbr.rel (%p275) target = $region40
        $region39: #{tpu_custom_call.1} parent=27 // pred_region
          %s279 = ssub.s32 128, 128
          %280 = vsyncadd %s271, %s279
          %s281 = smul.addr %s20, 128
          %s282 = scalar_lea.hbm %s2, %s281
          %s284 = sshll.u32 %s274, 4
          %s285 = int_to_ptr.vmem [resolvable:$true] %s284
          %287 = dma.vmem_to_hbm [thread:$0]  %s285, 128, %s282, %s271
        $region40: #{tpu_custom_call.1} parent=27 // pred_fallthru
          _
      $region28: #{tpu_custom_call.1} parent=5 // pred_fallthru
        _
      %p288 = scmp.le.s32.totalorder 2, %s11
      // Predicated region
      $region41: #{tpu_custom_call.1} parent=5 // pred_check
        %p289 = pneg %p288
      $region42: #{tpu_custom_call.1} parent=5 // pred_check_branch
        %291 = sbr.rel (%p289) target = $region44
      $region43: #{tpu_custom_call.1} parent=5 // pred_region
        %s292 = ssub.s32 %s11, 2
        // Predicated region
        $region45: #{tpu_custom_call.1} parent=43 // pred_check
          %p293 = pneg %p116
        $region46: #{tpu_custom_call.1} parent=43 // pred_check_branch
          %295 = sbr.rel (%p293) target = $region48
        $region47: #{tpu_custom_call.1} parent=43 // pred_region
          %s296 = sand.u32 %s101, 1
          %s297 = scalar_lea.sflag [#allocation4], %s296
          %s298 = sand.u32 %s101, 1
          %s299 = smul.addr %s298, 8
          %s300 = scalar_lea.vmem [#allocation3], %s299
          %301 = dma.done %s297, 128
        $region48: #{tpu_custom_call.1} parent=43 // pred_fallthru
          _
      $region44: #{tpu_custom_call.1} parent=5 // pred_fallthru
        _
    $region6: #{tpu_custom_call.1} parent=1 // loop_footer
      %s15 = sadd.s32 1, %s11
    $region7: #{tpu_custom_call.1} parent=1 // loop_footer_branch
      %10 = sbr.rel target = $region3
    $region8: #{tpu_custom_call.1} parent=1 // loop_exit
      _
    %302 = vsyncpa [#allocation4], 1
    %s303 = scalar_lea.sflag [#allocation4], 1
    %304 = vsyncpa %s303, 1

</llo_original>
